<compile_context>
chip_gen: v7x
topology: tpu7x:2x2x1
jax: 0.10.0
libtpu: 0.0.40
codegen_flags: <defaults>
</compile_context>

<pallas_src>
import functools

import jax
import jax.numpy as jnp
from jax import lax
from jax.experimental import pallas as pl
from jax.experimental.pallas import tpu as pltpu


def _grid_sample_kernel(coords_ref, x_ref, o_ref, mt_ref, *, H, W, separable):
    """One (batch, out-tile, channel-block) grid step.

    coords_ref: (1, 8, T)   rows: y0, y1, wy0, wy1, x0, x1, wx0, wx1  (f32)
    x_ref     : (1, Cb, HW) input channels, flattened spatial
    o_ref     : (1, Cb, T)  output tile
    mt_ref    : (HW, T)     VMEM scratch: transposed sampling matrix, cached
                            across channel blocks of the same (batch, out-tile).
    """
    cb = pl.program_id(2)

    @pl.when(cb == 0)
    def _build_sampling_matrix():
        c = coords_ref[0].astype(jnp.float32)                     # (8, T)
        y0, y1, wy0, wy1 = c[0:1], c[1:2], c[2:3], c[3:4]
        x0, x1, wx0, wx1 = c[4:5], c[5:6], c[6:7], c[7:8]
        t = c.shape[-1]

        if separable:
            # O(T*(H+W)) compares/selects, then one O(T*HW) multiply.
            p_iota = lax.broadcasted_iota(jnp.int32, (H, t), 0).astype(jnp.float32)
            q_iota = lax.broadcasted_iota(jnp.int32, (W, t), 0).astype(jnp.float32)
            wy = (jnp.where(p_iota == y0, wy0, 0.0)
                  + jnp.where(p_iota == y1, wy1, 0.0))            # (H, T)
            wx = (jnp.where(q_iota == x0, wx0, 0.0)
                  + jnp.where(q_iota == x1, wx1, 0.0))            # (W, T)
            # (H,1,T)*(1,W,T) -> (H,W,T) -> (HW,T): collapses major dims only,
            # layout-trivial because W % 8 == 0 (sublane aligned).
            mt = (wy[:, None, :] * wx[None, :, :]).reshape(H * W, t)
        else:
            # General-W fallback: full-size compares against row/col index planes.
            m_idx = lax.broadcasted_iota(jnp.int32, (H * W, t), 0)
            p_idx = (m_idx // W).astype(jnp.float32)
            q_idx = (m_idx % W).astype(jnp.float32)
            wy = (jnp.where(p_idx == y0, wy0, 0.0)
                  + jnp.where(p_idx == y1, wy1, 0.0))
            wx = (jnp.where(q_idx == x0, wx0, 0.0)
                  + jnp.where(q_idx == x1, wx1, 0.0))
            mt = wy * wx                                          # (HW, T)

        # Out-of-range neighbours (x1 == W, y0 == -1, ...) never match the iota,
        # so they contribute 0 -> matches grid_sample's default zero padding.
        mt_ref[...] = mt.astype(mt_ref.dtype)

    xb = x_ref[0].astype(mt_ref.dtype)                            # (Cb, HW)
    z = lax.dot_general(xb, mt_ref[...], (((1,), (0,)), ((), ())),
                        preferred_element_type=jnp.float32)       # (Cb, T)
    o_ref[0] = z.astype(o_ref.dtype)


def _largest_aligned_divisor(n, cap, align):
    """Largest divisor of n that is <= cap and a multiple of `align` (TPU block
    constraint); falls back to n itself (untiled) if none exists."""
    if n <= cap:
        return n
    t = cap - (cap % align)
    while t >= align:
        if n % t == 0:
            return t
        t -= align
    return n


def _identity_grid(n, h, w):
    """F.affine_grid(identity theta, (n, c, h, w), align_corners=True)."""
    xs = jnp.linspace(-1.0, 1.0, w, dtype=jnp.float32)
    ys = jnp.linspace(-1.0, 1.0, h, dtype=jnp.float32)
    gx = jnp.broadcast_to(xs[None, :], (h, w))
    gy = jnp.broadcast_to(ys[:, None], (h, w))
    base = jnp.stack([gx, gy], axis=-1)                           # (h, w, 2)
    return jnp.broadcast_to(base[None], (n, h, w, 2))


def flow_gradient_forward(x, flow=None, *, use_bf16=False, tile_out=None, c_block=None):
    """Pallas implementation of FlowGradient.forward.

    x    : (N, C, H, W)
    flow : optional (N, H, W, 2) displacement added to the identity grid.
           flow=None reproduces the module's zero-flow Variable (the default).
    """
    N, C, H, W = x.shape
    HW = H * W

    batch_invariant = flow is None
    if batch_invariant:
        # Zero flow: the grid is identical for every batch element, so fold the
        # batch into the streamed (channel) dim and build M once per output tile.
        g = _identity_grid(1, H, W)
        Nb, Cb = 1, N * C
        x_flat = x.reshape(1, N * C, HW)
    else:
        g = _identity_grid(N, H, W) + flow.astype(jnp.float32)
        Nb, Cb = N, C
        x_flat = x.reshape(N, C, HW)

    gx = g[..., 0].reshape(Nb, HW)
    gy = g[..., 1].reshape(Nb, HW)

    # Un-normalize (align_corners=True) and derive bilinear corner weights,
    # lane-dense, once, in the wrapper: O(N*HW) work.
    fx = (gx + 1.0) * 0.5 * (W - 1)
    fy = (gy + 1.0) * 0.5 * (H - 1)
    x0 = jnp.floor(fx)
    y0 = jnp.floor(fy)
    wx1 = fx - x0
    wy1 = fy - y0
    coords = jnp.stack(
        [y0, y0 + 1.0, 1.0 - wy1, wy1, x0, x0 + 1.0, 1.0 - wx1, wx1], axis=1
    ).astype(jnp.float32)                                         # (Nb, 8, HW)

    # Tile selection: keep M^T scratch and each (double-buffered) x block ~4 MiB
    # so the kernel fits comfortably under the 32 MiB scoped-VMEM default on
    # v5e/v6e and the tighter v7x budget (64 MiB physical).
    if tile_out is None:
        t_cap = max(128, min(2048, (4 * 1024 * 1024) // (HW * 4)))
        tile_out = _largest_aligned_divisor(HW, t_cap, 128)
    if c_block is None:
        c_cap = max(8, min(512, (4 * 1024 * 1024) // (HW * 4)))
        c_block = _largest_aligned_divisor(Cb, c_cap, 8)
    if HW % tile_out or (tile_out != HW and tile_out % 128):
        raise ValueError(f"tile_out={tile_out} must divide H*W={HW} and be a multiple of 128")
    if Cb % c_block or (c_block != Cb and c_block % 8):
        raise ValueError(f"c_block={c_block} must divide {Cb} and be a multiple of 8")

    compute_dtype = jnp.bfloat16 if use_bf16 else jnp.float32
    kernel = functools.partial(_grid_sample_kernel, H=H, W=W, separable=(W % 8 == 0))

    z_flat = pl.pallas_call(
        kernel,
        out_shape=jax.ShapeDtypeStruct((Nb, Cb, HW), x.dtype),
        grid_spec=pltpu.PrefetchScalarGridSpec(
            num_scalar_prefetch=0,
            grid=(Nb, HW // tile_out, Cb // c_block),
            in_specs=[
                pl.BlockSpec((1, 8, tile_out), lambda n, ot, cb: (n, 0, ot)),
                pl.BlockSpec((1, c_block, HW), lambda n, ot, cb: (n, cb, 0)),
            ],
            out_specs=pl.BlockSpec((1, c_block, tile_out), lambda n, ot, cb: (n, cb, ot)),
            scratch_shapes=[pltpu.VMEM((HW, tile_out), compute_dtype)],
        ),
        compiler_params=pltpu.CompilerParams(
            dimension_semantics=("parallel", "parallel", "arbitrary")),
    )(coords, x_flat)

    return z_flat.reshape(N, C, H, W)


# TODO(synk): FlowGradient.calculate() (autograd grad of a downstream loss w.r.t.
# the zero-flow Variable, squared and averaged) is a backward-pass regularizer,
# not part of the forward output; omitted.


def _grid_sample_ref(x, grid):
    """Pure-JAX bilinear grid_sample (zero padding, align_corners=True) reference."""
    N, C, H, W = x.shape
    gx, gy = grid[..., 0], grid[..., 1]
    fx = (gx + 1.0) * 0.5 * (W - 1)
    fy = (gy + 1.0) * 0.5 * (H - 1)
    x0 = jnp.floor(fx); x1 = x0 + 1.0
    y0 = jnp.floor(fy); y1 = y0 + 1.0
    wx1 = fx - x0; wx0 = 1.0 - wx1
    wy1 = fy - y0; wy0 = 1.0 - wy1
    bidx = jnp.arange(N)[:, None, None, None]
    cidx = jnp.arange(C)[None, :, None, None]

    def corner(xi, yi, wgt):
        valid = (xi >= 0) & (xi <= W - 1) & (yi >= 0) & (yi <= H - 1)
        xc = jnp.clip(xi, 0, W - 1).astype(jnp.int32)[:, None]
        yc = jnp.clip(yi, 0, H - 1).astype(jnp.int32)[:, None]
        v = x[bidx, cidx, yc, xc] * valid[:, None].astype(x.dtype)
        return v * wgt[:, None]

    return (corner(x0, y0, wy0 * wx0) + corner(x1, y0, wy0 * wx1)
            + corner(x0, y1, wy1 * wx0) + corner(x1, y1, wy1 * wx1))


if __name__ == "__main__":
    key = jax.random.PRNGKey(0)
    k_x, k_f = jax.random.split(key)
    N, C, H, W = 2, 8, 16, 16
    x = jax.random.normal(k_x, (N, C, H, W), dtype=jnp.float32)

    # 1) Module default: zero flow.  Identity grid + zero flow => grid_sample is
    #    (numerically) the identity map.  Uses the fused batch-invariant path with
    #    2 output tiles x 2 channel blocks (exercises the cached-M^T reuse).
    z = jax.block_until_ready(flow_gradient_forward(x, tile_out=128, c_block=8))
    assert z.shape == (N, C, H, W)
    err = float(jnp.max(jnp.abs(z - x)))
    assert err < 1e-3, f"identity path max err {err}"

    # 2) Non-trivial per-batch flow, f32 path, vs a pure-JAX bilinear reference.
    flow = 0.25 * jax.random.normal(k_f, (N, H, W, 2), dtype=jnp.float32)
    ref = _grid_sample_ref(x, _identity_grid(N, H, W) + flow)
    z2 = jax.block_until_ready(flow_gradient_forward(x, flow, tile_out=128))
    err2 = float(jnp.max(jnp.abs(z2 - ref)))
    assert err2 < 1e-4, f"flow path max err {err2}"

    # 3) bf16 MXU path (weights + activations bf16, f32 accumulation).
    z3 = jax.block_until_ready(
        flow_gradient_forward(x, flow, use_bf16=True, tile_out=128))
    err3 = float(jnp.max(jnp.abs(z3 - ref)))
    assert err3 < 1e-1, f"bf16 path max err {err3}"

    print("KERNEL_OK")
</pallas_src>

<mosaic_0001>
module attributes {stable_mosaic.version = 11 : i64} {
  func.func @_grid_sample_kernel(%arg0: i32, %arg1: i32, %arg2: i32, %arg3: memref<1x8x128xf32, #tpu.memory_space<vmem>>, %arg4: memref<1x8x256xf32, #tpu.memory_space<vmem>>, %arg5: memref<1x8x128xf32, #tpu.memory_space<vmem>>, %arg6: memref<256x128xf32, #tpu.memory_space<vmem>>) attributes {dimension_semantics = [#tpu.dimension_semantics<parallel>, #tpu.dimension_semantics<parallel>, #tpu.dimension_semantics<arbitrary>], iteration_bounds = array<i64: 1, 2, 2>, scalar_prefetch = 0 : i64, scratch_operands = 1 : i64, tpu.core_type = #tpu.core_type<tc>, window_params = [{transform_indices = @transform_0, window_bounds = array<i64: 1, 8, 128>}, {transform_indices = @transform_1, window_bounds = array<i64: 1, 8, 256>}, {transform_indices = @transform_2, window_bounds = array<i64: 1, 8, 128>}]} {
    %c0_i32 = arith.constant 0 : i32
    %0 = arith.cmpi eq, %arg2, %c0_i32 : i32
    %1 = arith.extui %0 : i1 to i32
    %c0_i32_0 = arith.constant 0 : i32
    %2 = arith.cmpi ne, %1, %c0_i32_0 : i32
    scf.if %2 {
      %c0_8 = arith.constant 0 : index
      %c0_9 = arith.constant 0 : index
      %c0_10 = arith.constant 0 : index
      %10 = vector.load %arg3[%c0_8, %c0_9, %c0_10] : memref<1x8x128xf32, #tpu.memory_space<vmem>>, vector<1x8x128xf32>
      %11 = vector.shape_cast %10 : vector<1x8x128xf32> to vector<8x128xf32>
      %12 = vector.extract_strided_slice %11 {offsets = [0, 0], sizes = [1, 128], strides = [1, 1]} : vector<8x128xf32> to vector<1x128xf32>
      %13 = vector.extract_strided_slice %11 {offsets = [1, 0], sizes = [1, 128], strides = [1, 1]} : vector<8x128xf32> to vector<1x128xf32>
      %14 = vector.extract_strided_slice %11 {offsets = [2, 0], sizes = [1, 128], strides = [1, 1]} : vector<8x128xf32> to vector<1x128xf32>
      %15 = vector.extract_strided_slice %11 {offsets = [3, 0], sizes = [1, 128], strides = [1, 1]} : vector<8x128xf32> to vector<1x128xf32>
      %16 = vector.extract_strided_slice %11 {offsets = [4, 0], sizes = [1, 128], strides = [1, 1]} : vector<8x128xf32> to vector<1x128xf32>
      %17 = vector.extract_strided_slice %11 {offsets = [5, 0], sizes = [1, 128], strides = [1, 1]} : vector<8x128xf32> to vector<1x128xf32>
      %18 = vector.extract_strided_slice %11 {offsets = [6, 0], sizes = [1, 128], strides = [1, 1]} : vector<8x128xf32> to vector<1x128xf32>
      %19 = vector.extract_strided_slice %11 {offsets = [7, 0], sizes = [1, 128], strides = [1, 1]} : vector<8x128xf32> to vector<1x128xf32>
      %20 = tpu.iota {dimensions = array<i32: 0>} : vector<16x128xi32>
      %21 = arith.sitofp %20 : vector<16x128xi32> to vector<16x128xf32>
      %22 = tpu.iota {dimensions = array<i32: 0>} : vector<16x128xi32>
      %23 = arith.sitofp %22 : vector<16x128xi32> to vector<16x128xf32>
      %24 = vector.broadcast %12 : vector<1x128xf32> to vector<16x128xf32>
      %25 = arith.cmpf oeq, %21, %24 : vector<16x128xf32>
      %cst_11 = arith.constant 0.000000e+00 : f32
      %26 = vector.shape_cast %14 : vector<1x128xf32> to vector<1x128xf32>
      %27 = vector.broadcast %26 : vector<1x128xf32> to vector<16x128xf32>
      %28 = vector.broadcast %cst_11 : f32 to vector<16x128xf32>
      %29 = arith.select %25, %27, %28 : vector<16x128xi1>, vector<16x128xf32>
      %30 = vector.broadcast %13 : vector<1x128xf32> to vector<16x128xf32>
      %31 = arith.cmpf oeq, %21, %30 : vector<16x128xf32>
      %cst_12 = arith.constant 0.000000e+00 : f32
      %32 = vector.shape_cast %15 : vector<1x128xf32> to vector<1x128xf32>
      %33 = vector.broadcast %32 : vector<1x128xf32> to vector<16x128xf32>
      %34 = vector.broadcast %cst_12 : f32 to vector<16x128xf32>
      %35 = arith.select %31, %33, %34 : vector<16x128xi1>, vector<16x128xf32>
      %36 = arith.addf %29, %35 : vector<16x128xf32>
      %37 = vector.broadcast %16 : vector<1x128xf32> to vector<16x128xf32>
      %38 = arith.cmpf oeq, %23, %37 : vector<16x128xf32>
      %cst_13 = arith.constant 0.000000e+00 : f32
      %39 = vector.shape_cast %18 : vector<1x128xf32> to vector<1x128xf32>
      %40 = vector.broadcast %39 : vector<1x128xf32> to vector<16x128xf32>
      %41 = vector.broadcast %cst_13 : f32 to vector<16x128xf32>
      %42 = arith.select %38, %40, %41 : vector<16x128xi1>, vector<16x128xf32>
      %43 = vector.broadcast %17 : vector<1x128xf32> to vector<16x128xf32>
      %44 = arith.cmpf oeq, %23, %43 : vector<16x128xf32>
      %cst_14 = arith.constant 0.000000e+00 : f32
      %45 = vector.shape_cast %19 : vector<1x128xf32> to vector<1x128xf32>
      %46 = vector.broadcast %45 : vector<1x128xf32> to vector<16x128xf32>
      %47 = vector.broadcast %cst_14 : f32 to vector<16x128xf32>
      %48 = arith.select %44, %46, %47 : vector<16x128xi1>, vector<16x128xf32>
      %49 = arith.addf %42, %48 : vector<16x128xf32>
      %50 = vector.shape_cast %36 : vector<16x128xf32> to vector<16x1x128xf32>
      %51 = vector.shape_cast %49 : vector<16x128xf32> to vector<1x16x128xf32>
      %52 = vector.broadcast %50 : vector<16x1x128xf32> to vector<16x16x128xf32>
      %53 = vector.broadcast %51 : vector<1x16x128xf32> to vector<16x16x128xf32>
      %54 = arith.mulf %52, %53 : vector<16x16x128xf32>
      %55 = vector.shape_cast %54 : vector<16x16x128xf32> to vector<256x128xf32>
      %c0_15 = arith.constant 0 : index
      %c0_16 = arith.constant 0 : index
      %56 = vector.load %arg6[%c0_15, %c0_16] : memref<256x128xf32, #tpu.memory_space<vmem>>, vector<256x128xf32>
      tpu.vector_store %arg6[%c0_15, %c0_16], %55 {strides = array<i32>} : memref<256x128xf32, #tpu.memory_space<vmem>>, vector<256x128xf32>,
    } else {
    }
    %c0 = arith.constant 0 : index
    %c0_1 = arith.constant 0 : index
    %c0_2 = arith.constant 0 : index
    %3 = vector.load %arg4[%c0, %c0_1, %c0_2] : memref<1x8x256xf32, #tpu.memory_space<vmem>>, vector<1x8x256xf32>
    %4 = vector.shape_cast %3 : vector<1x8x256xf32> to vector<8x256xf32>
    %c0_3 = arith.constant 0 : index
    %c0_4 = arith.constant 0 : index
    %5 = vector.load %arg6[%c0_3, %c0_4] : memref<256x128xf32, #tpu.memory_space<vmem>>, vector<256x128xf32>
    %cst = arith.constant dense<0.000000e+00> : vector<8x128xf32>
    %6 = tpu.matmul %4, %5, %cst {dimension_numbers = #tpu.dot_dimension_numbers<[1], [0], [0], [1], [0, 0, 1, 1], [], []>} : vector<8x256xf32>, vector<256x128xf32>, vector<8x128xf32> -> vector<8x128xf32>
    %c0_5 = arith.constant 0 : index
    %c0_6 = arith.constant 0 : index
    %c0_7 = arith.constant 0 : index
    %7 = vector.load %arg5[%c0_5, %c0_6, %c0_7] : memref<1x8x128xf32, #tpu.memory_space<vmem>>, vector<1x8x128xf32>
    %8 = vector.shape_cast %7 : vector<1x8x128xf32> to vector<8x128xf32>
    %9 = vector.shape_cast %6 : vector<8x128xf32> to vector<1x8x128xf32>
    tpu.vector_store %arg5[%c0_5, %c0_6, %c0_7], %9 {strides = array<i32>} : memref<1x8x128xf32, #tpu.memory_space<vmem>>, vector<1x8x128xf32>,
    return
  }
  func.func @transform_0(%arg0: i32, %arg1: i32, %arg2: i32) -> (i32, i32, i32) {
    %c0_i32 = arith.constant 0 : i32
    %c0_i32_0 = arith.constant 0 : i32
    return %arg0, %c0_i32, %arg1 : i32, i32, i32
  }
  func.func @transform_1(%arg0: i32, %arg1: i32, %arg2: i32) -> (i32, i32, i32) {
    %c0_i32 = arith.constant 0 : i32
    %c0_i32_0 = arith.constant 0 : i32
    return %arg0, %arg2, %c0_i32 : i32, i32, i32
  }
  func.func @transform_2(%arg0: i32, %arg1: i32, %arg2: i32) -> (i32, i32, i32) {
    %c0_i32 = arith.constant 0 : i32
    return %arg0, %arg2, %arg1 : i32, i32, i32
  }
}

</mosaic_0001>

<llo_original>
// kernel: tpu_custom_call.1
$region0: #{tpu_custom_call.1}
  #allocation0 [shape = 'u32[]', space=smem, size = 0x4, offset = 0x4, fixed_abs, tag = 'smem constant byte address 0x4 - core index']
  #allocation1 [shape = 'u32[144,128]{1,0:T(1,128)}', space=vmem, size = 0x12000, scoped, tag = 'internal scratch']
  #allocation2 [shape = 'f32[256,128]{1,0:T(8,128)}', space=vmem, size = 0x20000, scoped, tag = 'scratch operand']
  %s0 = inlined_call_operand.hbm [shape: f32[1,8,256], index: 0, kind: input, shape index: {}]
  %s1 = inlined_call_operand.hbm [shape: f32[1,16,256], index: 1, kind: input, shape index: {}]
  %s2 = inlined_call_operand.hbm [shape: f32[1,16,256], index: 2, kind: output, shape index: {}]
  %s3 = sld [smem:[#allocation0]]
  $region53: #{tpu_custom_call.1} parent=0
    _
  %s5 = ssub.s32 1, %s3
  %s6 = scalar_select 0, %s5, %s3
  $region1: #{tpu_custom_call.1} parent=0
    #allocation3 [shape = 'u8[8192]{0}', space=vmem, size = 0x2000, scoped, tag = 'input window, operand 0']
    #allocation4 [shape = 's32[2]{0}', space=sflag, size = 0x8, scoped, tag = 'scoped memory for tpu_custom_call.1']
    #allocation5 [shape = 's32[2]{0}', space=sflag, size = 0x8, scoped, tag = 'scoped memory for tpu_custom_call.1']
    #allocation6 [shape = 'u8[16384]{0}', space=vmem, size = 0x4000, scoped, tag = 'input window, operand 1']
    #allocation7 [shape = 's32[2]{0}', space=sflag, size = 0x8, scoped, tag = 'scoped memory for tpu_custom_call.1']
    #allocation8 [shape = 'u8[8192]{0}', space=vmem, size = 0x2000, scoped, tag = 'output window, operand 0']
    %7 = vsyncpa [#allocation4], 0
    %s8 = scalar_lea.sflag [#allocation4], 1
    %9 = vsyncpa %s8, 0
    %10 = vsyncpa [#allocation7], 0
    %s11 = scalar_lea.sflag [#allocation7], 1
    %12 = vsyncpa %s11, 0
    %13 = vsyncpa [#allocation5], 0
    %s14 = scalar_lea.sflag [#allocation5], 1
    %15 = vsyncpa %s14, 0
    loop: start=0, step=1, limit=6
    $region2: #{tpu_custom_call.1} parent=1 // loop_pre_header
      _
    $region3: #{tpu_custom_call.1} parent=1 // loop_header
      %s17 = sphi 0, %s21
      %p18 = scmp.ge.s32.totalorder %s17, 6
      %s24 = sphi 0, %s43
      %s25 = sphi 0, %s39
      %s26 = sphi 0, %s35
      %s27 = sphi 0, %s24
      %s28 = sphi 0, %s25
      %s29 = sphi 0, %s26
      %s30 = sphi 0, %s27
      %s31 = sphi 0, %s28
      %s32 = sphi 0, %s29
      %s48 = sphi 0, %s50
      %s51 = sphi 0, %s48
      %s52 = sphi 0, %s51
      %s68 = sphi 0, %s52
      %s76 = sphi 0, %s78
      %s79 = sphi 0, %s76
      %s80 = sphi 0, %s79
      %s96 = sphi 0, %s80
      %s106 = sphi 0, %s108
      %s109 = sphi 0, %s106
      %s110 = sphi 0, %s109
      %s126 = sphi 0, %s110
    $region4: #{tpu_custom_call.1} parent=1 // loop_header_branch
      %20 = sbr.rel (%p18) target = $region8
    $region5: #{tpu_custom_call.1} parent=1 // loop_body
      %s22 = ssub.s32 %s17, 1
      %s23 = ssub.s32 %s17, 2
      %s33 = sadd.s32 1, %s26
      %p34 = scmp.ge.s32.totalorder %s33, 2
      %s35 = scalar_select %p34, 0, %s33
      %s36 = sadd.s32 1, %s25
      %s37 = scalar_select %p34, %s36, %s25
      %p38 = scmp.ge.s32.totalorder %s37, 2
      %s39 = scalar_select %p38, 0, %s37
      %s40 = sadd.s32 1, %s24
      %s41 = scalar_select %p38, %s40, %s24
      %p42 = scmp.ge.s32.totalorder %s41, 1
      %s43 = scalar_select %p42, 0, %s41
      %s44 = ssub.s32 %s24, %s43
      %s45 = ssub.s32 %s25, %s39
      %s46 = sor.u32 %s44, %s45
      %p47 = scmp.eq.s32.totalorder %s46, 0
      %s49 = sadd.s32 %s48, 1
      %s50 = scalar_select %p47, %s48, %s49
      %p53 = pneg %p47
      %p54 = scmp.eq.s32.totalorder %s17, 3
      %p55 = por %p53, %p54
      %p56 = scmp.ne.s32.totalorder %s48, %s51
      %p57 = scmp.eq.s32.totalorder %s17, 0
      %p58 = por %p56, %p57
      %p59 = scmp.ne.s32.totalorder %s48, %s51
      %p60 = scmp.eq.s32.totalorder %s22, 3
      %p61 = por %p59, %p60
      %p62 = scmp.ne.s32.totalorder %s51, %s52
      %p63 = scmp.eq.s32.totalorder %s22, 0
      %p64 = por %p62, %p63
      %p65 = scmp.ne.s32.totalorder %s51, %s52
      %p66 = scmp.eq.s32.totalorder %s23, 3
      %p67 = por %p65, %p66
      %p69 = scmp.ne.s32.totalorder %s52, %s68
      %p70 = scmp.eq.s32.totalorder %s23, 0
      %p71 = por %p69, %p70
      %s72 = ssub.s32 %s24, %s43
      %s73 = ssub.s32 %s26, %s35
      %s74 = sor.u32 %s72, %s73
      %p75 = scmp.eq.s32.totalorder %s74, 0
      %s77 = sadd.s32 %s76, 1
      %s78 = scalar_select %p75, %s76, %s77
      %p81 = pneg %p75
      %p82 = scmp.eq.s32.totalorder %s17, 3
      %p83 = por %p81, %p82
      %p84 = scmp.ne.s32.totalorder %s76, %s79
      %p85 = scmp.eq.s32.totalorder %s17, 0
      %p86 = por %p84, %p85
      %p87 = scmp.ne.s32.totalorder %s76, %s79
      %p88 = scmp.eq.s32.totalorder %s22, 3
      %p89 = por %p87, %p88
      %p90 = scmp.ne.s32.totalorder %s79, %s80
      %p91 = scmp.eq.s32.totalorder %s22, 0
      %p92 = por %p90, %p91
      %p93 = scmp.ne.s32.totalorder %s79, %s80
      %p94 = scmp.eq.s32.totalorder %s23, 3
      %p95 = por %p93, %p94
      %p97 = scmp.ne.s32.totalorder %s80, %s96
      %p98 = scmp.eq.s32.totalorder %s23, 0
      %p99 = por %p97, %p98
      %s100 = ssub.s32 %s24, %s43
      %s101 = ssub.s32 %s26, %s35
      %s102 = sor.u32 %s100, %s101
      %s103 = ssub.s32 %s25, %s39
      %s104 = sor.u32 %s102, %s103
      %p105 = scmp.eq.s32.totalorder %s104, 0
      %s107 = sadd.s32 %s106, 1
      %s108 = scalar_select %p105, %s106, %s107
      %p111 = pneg %p105
      %p112 = scmp.eq.s32.totalorder %s17, 3
      %p113 = por %p111, %p112
      %p114 = scmp.ne.s32.totalorder %s106, %s109
      %p115 = scmp.eq.s32.totalorder %s17, 0
      %p116 = por %p114, %p115
      %p117 = scmp.ne.s32.totalorder %s106, %s109
      %p118 = scmp.eq.s32.totalorder %s22, 3
      %p119 = por %p117, %p118
      %p120 = scmp.ne.s32.totalorder %s109, %s110
      %p121 = scmp.eq.s32.totalorder %s22, 0
      %p122 = por %p120, %p121
      %p123 = scmp.ne.s32.totalorder %s109, %s110
      %p124 = scmp.eq.s32.totalorder %s23, 3
      %p125 = por %p123, %p124
      %p127 = scmp.ne.s32.totalorder %s110, %s126
      %p128 = scmp.eq.s32.totalorder %s23, 0
      %p129 = por %p127, %p128
      %p130 = scmp.le.s32.totalorder 1, %s17
      %p131 = scmp.lt.s32.totalorder %s17, 5
      %p132 = pnand %p130, %p131
      %p133 = pneg %p132
      // Predicated region
      $region9: #{tpu_custom_call.1} parent=5 // pred_check
        _
      $region10: #{tpu_custom_call.1} parent=5 // pred_check_branch
        %135 = sbr.rel (%p132) target = $region12
      $region11: #{tpu_custom_call.1} parent=5 // pred_region
        %s136 = ssub.s32 %s17, 1
      $region12: #{tpu_custom_call.1} parent=5 // pred_fallthru
        _
      %p137 = scmp.lt.s32.totalorder %s17, 4
      // Predicated region
      $region13: #{tpu_custom_call.1} parent=5 // pred_check
        %p138 = pneg %p137
      $region14: #{tpu_custom_call.1} parent=5 // pred_check_branch
        %140 = sbr.rel (%p138) target = $region16
      $region15: #{tpu_custom_call.1} parent=5 // pred_region
        // Predicated region
        $region17: #{tpu_custom_call.1} parent=15 // pred_check
          %p141 = pneg %p58
        $region18: #{tpu_custom_call.1} parent=15 // pred_check_branch
          %143 = sbr.rel (%p141) target = $region20
        $region19: #{tpu_custom_call.1} parent=15 // pred_region
          %s144 = sand.u32 %s48, 1
          %s145 = scalar_lea.sflag [#allocation4], %s144
          %s146 = sand.u32 %s48, 1
          %s147 = smul.addr %s146, 8
          %s148 = scalar_lea.vmem [#allocation3], %s147
          %s150 = ssub.s32 128, 128
          %151 = vsyncadd %s145, %s150
          %s152 = smul.addr %s24, 2
          %s153 = sadd.s32 %s25, %s152
          %s154 = smul.addr %s153, 128
          %s155 = scalar_lea.hbm %s0, %s154
          %s157 = sshll.u32 %s148, 4
          %s158 = int_to_ptr.vmem [resolvable:$true] %s157
          %160 = dma.hbm_to_vmem [thread:$0]  %s155, 128, %s158, %s145
        $region20: #{tpu_custom_call.1} parent=15 // pred_fallthru
          _
        // Predicated region
        $region21: #{tpu_custom_call.1} parent=15 // pred_check
          %p161 = pneg %p86
        $region22: #{tpu_custom_call.1} parent=15 // pred_check_branch
          %163 = sbr.rel (%p161) target = $region24
        $region23: #{tpu_custom_call.1} parent=15 // pred_region
          %s164 = sand.u32 %s76, 1
          %s165 = scalar_lea.sflag [#allocation7], %s164
          %s166 = sand.u32 %s76, 1
          %s167 = smul.addr %s166, 16
          %s168 = scalar_lea.vmem [#allocation6], %s167
          %s170 = ssub.s32 256, 256
          %171 = vsyncadd %s165, %s170
          %s172 = smul.addr %s26, 2
          %s173 = smul.addr %s24, 4
          %s174 = sadd.s32 %s172, %s173
          %s175 = smul.addr %s174, 128
          %s176 = scalar_lea.hbm %s1, %s175
          %s178 = sshll.u32 %s168, 4
          %s179 = int_to_ptr.vmem [resolvable:$true] %s178
          %181 = dma.hbm_to_vmem [thread:$0]  %s176, 256, %s179, %s165
        $region24: #{tpu_custom_call.1} parent=15 // pred_fallthru
          _
      $region16: #{tpu_custom_call.1} parent=5 // pred_fallthru
        _
      %p182 = scmp.le.s32.totalorder 1, %s17
      %p183 = scmp.lt.s32.totalorder %s17, 5
      %p184 = pnand %p182, %p183
      %p185 = pneg %p184
      // Predicated region
      $region25: #{tpu_custom_call.1} parent=5 // pred_check
        _
      $region26: #{tpu_custom_call.1} parent=5 // pred_check_branch
        %187 = sbr.rel (%p184) target = $region28
      $region27: #{tpu_custom_call.1} parent=5 // pred_region
        %s188 = ssub.s32 %s17, 1
        %s189 = sand.u32 %s51, 1
        %s190 = scalar_lea.sflag [#allocation4], %s189
        %s191 = sand.u32 %s51, 1
        %s192 = smul.addr %s191, 8
        %s193 = scalar_lea.vmem [#allocation3], %s192
        // Predicated region
        $region29: #{tpu_custom_call.1} parent=27 // pred_check
          %p194 = pneg %p64
        $region30: #{tpu_custom_call.1} parent=27 // pred_check_branch
          %196 = sbr.rel (%p194) target = $region32
        $region31: #{tpu_custom_call.1} parent=27 // pred_region
          %197 = dma.done %s190, 128
        $region32: #{tpu_custom_call.1} parent=27 // pred_fallthru
          _
        %s198 = sand.u32 %s79, 1
        %s199 = scalar_lea.sflag [#allocation7], %s198
        %s200 = sand.u32 %s79, 1
        %s201 = smul.addr %s200, 16
        %s202 = scalar_lea.vmem [#allocation6], %s201
        // Predicated region
        $region33: #{tpu_custom_call.1} parent=27 // pred_check
          %p203 = pneg %p92
        $region34: #{tpu_custom_call.1} parent=27 // pred_check_branch
          %205 = sbr.rel (%p203) target = $region36
        $region35: #{tpu_custom_call.1} parent=27 // pred_region
          %206 = dma.done %s199, 256
        $region36: #{tpu_custom_call.1} parent=27 // pred_fallthru
          _
        %s207 = sand.u32 %s51, 1
        %s208 = scalar_lea.sflag [#allocation4], %s207
        %s209 = sand.u32 %s51, 1
        %s210 = smul.addr %s209, 8
        %s211 = scalar_lea.vmem [#allocation3], %s210
        %p212 = pneg %p64
        %p213 = pneg %p61
        %s214 = sand.u32 %s79, 1
        %s215 = scalar_lea.sflag [#allocation7], %s214
        %s216 = sand.u32 %s79, 1
        %s217 = smul.addr %s216, 16
        %s218 = scalar_lea.vmem [#allocation6], %s217
        %p219 = pneg %p92
        %p220 = pneg %p89
        %p221 = pneg %p122
        %p222 = pneg %p119
        %s223 = sand.u32 %s109, 1
        %s224 = scalar_lea.sflag [#allocation5], %s223
        %s225 = sand.u32 %s109, 1
        %s226 = smul.addr %s225, 8
        %s227 = scalar_lea.vmem [#allocation8], %s226
        %p228 = scmp.eq.s32.totalorder %s29, 0
        // Predicated region
        $region37: #{tpu_custom_call.1} parent=27 // pred_check
          %p229 = pneg %p228
        $region38: #{tpu_custom_call.1} parent=27 // pred_check_branch
          %231 = sbr.rel (%p229) target = $region40
        $region39: #{tpu_custom_call.1} parent=27 // pred_region
          %v232 = vld [vmem:[%s193] sm:$0xff]
          %v233 = vlaneseq
          %v234 = vshrl.u32 %v233, 7
          %v235 = vadd.s32 %v234, 8
          %v236 = vcvt.s32.f32 %v234
          %v237 = vcvt.s32.f32 %v235
          %v238 = vlaneseq
          %v239 = vshrl.u32 %v238, 7
          %v240 = vsub.s32 0, %v239
          %v241 = vrot.slane %v232, %v240
          %vm242 = vcmp.eq.f32.partialorder %v236, %v241
          %vm243 = vcmp.eq.f32.partialorder %v237, %v241
          %v244 = vlaneseq
          %v245 = vshrl.u32 %v244, 7
          %v246 = vsub.s32 2, %v245
          %v247 = vrot.slane %v232, %v246
          %v248 = vsel %vm242, %v247, 0.0
          %v249 = vsel %vm243, %v247, 0.0
          %v250 = vlaneseq
          %v251 = vshrl.u32 %v250, 7
          %v252 = vsub.s32 1, %v251
          %v253 = vrot.slane %v232, %v252
          %vm254 = vcmp.eq.f32.partialorder %v236, %v253
          %vm255 = vcmp.eq.f32.partialorder %v237, %v253
          %v256 = vlaneseq
          %v257 = vshrl.u32 %v256, 7
          %v258 = vsub.s32 3, %v257
          %v259 = vrot.slane %v232, %v258
          %v260 = vsel %vm254, %v259, 0.0
          %v261 = vsel %vm255, %v259, 0.0
          %v262 = vadd.f32 %v248, %v260
          %v263 = vadd.f32 %v249, %v261
          %v264 = vlaneseq
          %v265 = vshrl.u32 %v264, 7
          %v266 = vsub.s32 4, %v265
          %v267 = vrot.slane %v232, %v266
          %vm268 = vcmp.eq.f32.partialorder %v236, %v267
          %vm269 = vcmp.eq.f32.partialorder %v237, %v267
          %v270 = vlaneseq
          %v271 = vshrl.u32 %v270, 7
          %v272 = vsub.s32 6, %v271
          %v273 = vrot.slane %v232, %v272
          %v274 = vsel %vm268, %v273, 0.0
          %v275 = vsel %vm269, %v273, 0.0
          %v276 = vlaneseq
          %v277 = vshrl.u32 %v276, 7
          %v278 = vsub.s32 5, %v277
          %v279 = vrot.slane %v232, %v278
          %vm280 = vcmp.eq.f32.partialorder %v236, %v279
          %vm281 = vcmp.eq.f32.partialorder %v237, %v279
          %v282 = vlaneseq
          %v283 = vshrl.u32 %v282, 7
          %v284 = vsub.s32 7, %v283
          %v285 = vrot.slane %v232, %v284
          %v286 = vsel %vm280, %v285, 0.0
          %v287 = vsel %vm281, %v285, 0.0
          %v288 = vadd.f32 %v274, %v286
          %v289 = vadd.f32 %v275, %v287
          %v292 = vcombine.high %v262, %v262
          %v294 = vunpack.c.l.s4 1966171168
          %v295 = vunpack.c.0.s8 %v294
          %v296 = vlaneseq
          %v297 = vshrl.u32 %v296, 7
          %v298 = vsub.s32 %v295, %v297
          %v299 = vrot.slane %v262, %v298
          %v301 = vunpack.c.l.s4 1966171168
          %v302 = vunpack.c.0.s8 %v301
          %v303 = vlaneseq
          %v304 = vshrl.u32 %v303, 7
          %v305 = vsub.s32 %v302, %v304
          %v306 = vrot.slane %v292, %v305
          %v307 = vcombine.high %v299, %v299
          %v308 = vcombine.high %v306, %v306
          %v310 = vunpack.c.l.s4 1966171168
          %v311 = vunpack.c.0.s8 %v310
          %v312 = vlaneseq
          %v313 = vshrl.u32 %v312, 7
          %v314 = vsub.s32 %v311, %v313
          %v315 = vrot.slane %v299, %v314
          %v317 = vunpack.c.l.s4 1966171168
          %v318 = vunpack.c.0.s8 %v317
          %v319 = vlaneseq
          %v320 = vshrl.u32 %v319, 7
          %v321 = vsub.s32 %v318, %v320
          %v322 = vrot.slane %v306, %v321
          %v324 = vunpack.c.l.s4 1966171168
          %v325 = vunpack.c.0.s8 %v324
          %v326 = vlaneseq
          %v327 = vshrl.u32 %v326, 7
          %v328 = vsub.s32 %v325, %v327
          %v329 = vrot.slane %v307, %v328
          %v331 = vunpack.c.l.s4 1966171168
          %v332 = vunpack.c.0.s8 %v331
          %v333 = vlaneseq
          %v334 = vshrl.u32 %v333, 7
          %v335 = vsub.s32 %v332, %v334
          %v336 = vrot.slane %v308, %v335
          %v337 = vcombine.high %v315, %v315
          %v338 = vcombine.high %v322, %v322
          %v339 = vcombine.high %v329, %v329
          %v340 = vcombine.high %v336, %v336
          %v341 = vcombine.high %v263, %v263
          %v343 = vunpack.c.l.s4 1966171168
          %v344 = vunpack.c.0.s8 %v343
          %v345 = vlaneseq
          %v346 = vshrl.u32 %v345, 7
          %v347 = vsub.s32 %v344, %v346
          %v348 = vrot.slane %v263, %v347
          %v350 = vunpack.c.l.s4 1966171168
          %v351 = vunpack.c.0.s8 %v350
          %v352 = vlaneseq
          %v353 = vshrl.u32 %v352, 7
          %v354 = vsub.s32 %v351, %v353
          %v355 = vrot.slane %v341, %v354
          %v356 = vcombine.high %v348, %v348
          %v357 = vcombine.high %v355, %v355
          %v359 = vunpack.c.l.s4 1966171168
          %v360 = vunpack.c.0.s8 %v359
          %v361 = vlaneseq
          %v362 = vshrl.u32 %v361, 7
          %v363 = vsub.s32 %v360, %v362
          %v364 = vrot.slane %v348, %v363
          %v366 = vunpack.c.l.s4 1966171168
          %v367 = vunpack.c.0.s8 %v366
          %v368 = vlaneseq
          %v369 = vshrl.u32 %v368, 7
          %v370 = vsub.s32 %v367, %v369
          %v371 = vrot.slane %v355, %v370
          %v373 = vunpack.c.l.s4 1966171168
          %v374 = vunpack.c.0.s8 %v373
          %v375 = vlaneseq
          %v376 = vshrl.u32 %v375, 7
          %v377 = vsub.s32 %v374, %v376
          %v378 = vrot.slane %v356, %v377
          %v380 = vunpack.c.l.s4 1966171168
          %v381 = vunpack.c.0.s8 %v380
          %v382 = vlaneseq
          %v383 = vshrl.u32 %v382, 7
          %v384 = vsub.s32 %v381, %v383
          %v385 = vrot.slane %v357, %v384
          %v386 = vcombine.high %v364, %v364
          %v387 = vcombine.high %v371, %v371
          %v388 = vcombine.high %v378, %v378
          %v389 = vcombine.high %v385, %v385
          %v390 = vlaneseq
          %v391 = vshrl.u32 %v390, 7
          %v392 = vsub.s32 0, %v391
          %v393 = vrot.slane %v315, %v392
          %v394 = vlaneseq
          %v395 = vshrl.u32 %v394, 7
          %v396 = vsub.s32 0, %v395
          %v397 = vrot.slane %v329, %v396
          %v398 = vlaneseq
          %v399 = vshrl.u32 %v398, 7
          %v400 = vsub.s32 0, %v399
          %v401 = vrot.slane %v337, %v400
          %v402 = vlaneseq
          %v403 = vshrl.u32 %v402, 7
          %v404 = vsub.s32 0, %v403
          %v405 = vrot.slane %v339, %v404
          %v406 = vlaneseq
          %v407 = vshrl.u32 %v406, 7
          %v408 = vsub.s32 0, %v407
          %v409 = vrot.slane %v322, %v408
          %v410 = vlaneseq
          %v411 = vshrl.u32 %v410, 7
          %v412 = vsub.s32 0, %v411
          %v413 = vrot.slane %v336, %v412
          %v414 = vlaneseq
          %v415 = vshrl.u32 %v414, 7
          %v416 = vsub.s32 0, %v415
          %v417 = vrot.slane %v338, %v416
          %v418 = vlaneseq
          %v419 = vshrl.u32 %v418, 7
          %v420 = vsub.s32 0, %v419
          %v421 = vrot.slane %v340, %v420
          %v422 = vlaneseq
          %v423 = vshrl.u32 %v422, 7
          %v424 = vsub.s32 0, %v423
          %v425 = vrot.slane %v364, %v424
          %v426 = vlaneseq
          %v427 = vshrl.u32 %v426, 7
          %v428 = vsub.s32 0, %v427
          %v429 = vrot.slane %v378, %v428
          %v430 = vlaneseq
          %v431 = vshrl.u32 %v430, 7
          %v432 = vsub.s32 0, %v431
          %v433 = vrot.slane %v386, %v432
          %v434 = vlaneseq
          %v435 = vshrl.u32 %v434, 7
          %v436 = vsub.s32 0, %v435
          %v437 = vrot.slane %v388, %v436
          %v438 = vlaneseq
          %v439 = vshrl.u32 %v438, 7
          %v440 = vsub.s32 0, %v439
          %v441 = vrot.slane %v371, %v440
          %v442 = vlaneseq
          %v443 = vshrl.u32 %v442, 7
          %v444 = vsub.s32 0, %v443
          %v445 = vrot.slane %v385, %v444
          %v446 = vlaneseq
          %v447 = vshrl.u32 %v446, 7
          %v448 = vsub.s32 0, %v447
          %v449 = vrot.slane %v387, %v448
          %v450 = vlaneseq
          %v451 = vshrl.u32 %v450, 7
          %v452 = vsub.s32 0, %v451
          %v453 = vrot.slane %v389, %v452
          %v470 = vmul.f32 %v393, %v288
          %v471 = vmul.f32 %v393, %v289
          %v472 = vmul.f32 %v397, %v288
          %v473 = vmul.f32 %v397, %v289
          %v474 = vmul.f32 %v401, %v288
          %v475 = vmul.f32 %v401, %v289
          %v476 = vmul.f32 %v405, %v288
          %v477 = vmul.f32 %v405, %v289
          %v478 = vmul.f32 %v409, %v288
          %v479 = vmul.f32 %v409, %v289
          %v480 = vmul.f32 %v413, %v288
          %v481 = vmul.f32 %v413, %v289
          %v482 = vmul.f32 %v417, %v288
          %v483 = vmul.f32 %v417, %v289
          %v484 = vmul.f32 %v421, %v288
          %v485 = vmul.f32 %v421, %v289
          %v486 = vmul.f32 %v425, %v288
          %v487 = vmul.f32 %v425, %v289
          %v488 = vmul.f32 %v429, %v288
          %v489 = vmul.f32 %v429, %v289
          %v490 = vmul.f32 %v433, %v288
          %v491 = vmul.f32 %v433, %v289
          %v492 = vmul.f32 %v437, %v288
          %v493 = vmul.f32 %v437, %v289
          %v494 = vmul.f32 %v441, %v288
          %v495 = vmul.f32 %v441, %v289
          %v496 = vmul.f32 %v445, %v288
          %v497 = vmul.f32 %v445, %v289
          %v498 = vmul.f32 %v449, %v288
          %v499 = vmul.f32 %v449, %v289
          %v500 = vmul.f32 %v453, %v288
          %v501 = vmul.f32 %v453, %v289
          %502 = vst [vmem:[#allocation2] sm:$0xff] %v470
          %503 = vst [vmem:[#allocation2 + $0x8] sm:$0xff] %v471
          %504 = vst [vmem:[#allocation2 + $0x10] sm:$0xff] %v472
          %505 = vst [vmem:[#allocation2 + $0x18] sm:$0xff] %v473
          %506 = vst [vmem:[#allocation2 + $0x20] sm:$0xff] %v474
          %507 = vst [vmem:[#allocation2 + $0x28] sm:$0xff] %v475
          %508 = vst [vmem:[#allocation2 + $0x30] sm:$0xff] %v476
          %509 = vst [vmem:[#allocation2 + $0x38] sm:$0xff] %v477
          %510 = vst [vmem:[#allocation2 + $0x40] sm:$0xff] %v478
          %511 = vst [vmem:[#allocation2 + $0x48] sm:$0xff] %v479
          %512 = vst [vmem:[#allocation2 + $0x50] sm:$0xff] %v480
          %513 = vst [vmem:[#allocation2 + $0x58] sm:$0xff] %v481
          %514 = vst [vmem:[#allocation2 + $0x60] sm:$0xff] %v482
          %515 = vst [vmem:[#allocation2 + $0x68] sm:$0xff] %v483
          %516 = vst [vmem:[#allocation2 + $0x70] sm:$0xff] %v484
          %517 = vst [vmem:[#allocation2 + $0x78] sm:$0xff] %v485
          %518 = vst [vmem:[#allocation2 + $0x80] sm:$0xff] %v486
          %519 = vst [vmem:[#allocation2 + $0x88] sm:$0xff] %v487
          %520 = vst [vmem:[#allocation2 + $0x90] sm:$0xff] %v488
          %521 = vst [vmem:[#allocation2 + $0x98] sm:$0xff] %v489
          %522 = vst [vmem:[#allocation2 + $0xa0] sm:$0xff] %v490
          %523 = vst [vmem:[#allocation2 + $0xa8] sm:$0xff] %v491
          %524 = vst [vmem:[#allocation2 + $0xb0] sm:$0xff] %v492
          %525 = vst [vmem:[#allocation2 + $0xb8] sm:$0xff] %v493
          %526 = vst [vmem:[#allocation2 + $0xc0] sm:$0xff] %v494
          %527 = vst [vmem:[#allocation2 + $0xc8] sm:$0xff] %v495
          %528 = vst [vmem:[#allocation2 + $0xd0] sm:$0xff] %v496
          %529 = vst [vmem:[#allocation2 + $0xd8] sm:$0xff] %v497
          %530 = vst [vmem:[#allocation2 + $0xe0] sm:$0xff] %v498
          %531 = vst [vmem:[#allocation2 + $0xe8] sm:$0xff] %v499
          %532 = vst [vmem:[#allocation2 + $0xf0] sm:$0xff] %v500
          %533 = vst [vmem:[#allocation2 + $0xf8] sm:$0xff] %v501
        $region40: #{tpu_custom_call.1} parent=27 // pred_fallthru
          _
        %v534 = vld [vmem:[%s202] sm:$0xff]
        %v535 = vld [vmem:[%s202 + $0x8] sm:$0xff]
        %v536 = vld [vmem:[#allocation2] sm:$0xff]
        %v537 = vld [vmem:[#allocation2 + $0x8] sm:$0xff]
        %v538 = vld [vmem:[#allocation2 + $0x10] sm:$0xff]
        %v539 = vld [vmem:[#allocation2 + $0x18] sm:$0xff]
        %v540 = vld [vmem:[#allocation2 + $0x20] sm:$0xff]
        %v541 = vld [vmem:[#allocation2 + $0x28] sm:$0xff]
        %v542 = vld [vmem:[#allocation2 + $0x30] sm:$0xff]
        %v543 = vld [vmem:[#allocation2 + $0x38] sm:$0xff]
        %v544 = vld [vmem:[#allocation2 + $0x40] sm:$0xff]
        %v545 = vld [vmem:[#allocation2 + $0x48] sm:$0xff]
        %v546 = vld [vmem:[#allocation2 + $0x50] sm:$0xff]
        %v547 = vld [vmem:[#allocation2 + $0x58] sm:$0xff]
        %v548 = vld [vmem:[#allocation2 + $0x60] sm:$0xff]
        %v549 = vld [vmem:[#allocation2 + $0x68] sm:$0xff]
        %v550 = vld [vmem:[#allocation2 + $0x70] sm:$0xff]
        %v551 = vld [vmem:[#allocation2 + $0x78] sm:$0xff]
        %v552 = vld [vmem:[#allocation2 + $0x80] sm:$0xff]
        %v553 = vld [vmem:[#allocation2 + $0x88] sm:$0xff]
        %v554 = vld [vmem:[#allocation2 + $0x90] sm:$0xff]
        %v555 = vld [vmem:[#allocation2 + $0x98] sm:$0xff]
        %v556 = vld [vmem:[#allocation2 + $0xa0] sm:$0xff]
        %v557 = vld [vmem:[#allocation2 + $0xa8] sm:$0xff]
        %v558 = vld [vmem:[#allocation2 + $0xb0] sm:$0xff]
        %v559 = vld [vmem:[#allocation2 + $0xb8] sm:$0xff]
        %v560 = vld [vmem:[#allocation2 + $0xc0] sm:$0xff]
        %v561 = vld [vmem:[#allocation2 + $0xc8] sm:$0xff]
        %v562 = vld [vmem:[#allocation2 + $0xd0] sm:$0xff]
        %v563 = vld [vmem:[#allocation2 + $0xd8] sm:$0xff]
        %v564 = vld [vmem:[#allocation2 + $0xe0] sm:$0xff]
        %v565 = vld [vmem:[#allocation2 + $0xe8] sm:$0xff]
        %v566 = vld [vmem:[#allocation2 + $0xf0] sm:$0xff]
        %v567 = vld [vmem:[#allocation2 + $0xf8] sm:$0xff]
        %568 = vmatprep.subr.mxu0 0.0
        %569 = vmatpush1.msra.mxu0 %v536
        %570 = vmatprep.subr.mxu0 0.0
        %571 = vmatpush1.msra.mxu0 %v537
        %572 = vmatprep.subr.mxu0 0.0
        %573 = vmatpush1.msra.mxu0 %v538
        %574 = vmatprep.subr.mxu0 0.0
        %575 = vmatpush1.msra.mxu0 %v539
        %576 = vmatprep.subr.mxu0 0.0
        %577 = vmatpush1.msra.mxu0 %v540
        %578 = vmatprep.subr.mxu0 0.0
        %579 = vmatpush1.msra.mxu0 %v541
        %580 = vmatprep.subr.mxu0 0.0
        %581 = vmatpush1.msra.mxu0 %v542
        %582 = vmatprep.subr.mxu0 0.0
        %583 = vmatpush1.msra.mxu0 %v543
        %584 = vmatprep.subr.mxu0 0.0
        %585 = vmatpush1.msra.mxu0 %v544
        %586 = vmatprep.subr.mxu0 0.0
        %587 = vmatpush1.msra.mxu0 %v545
        %588 = vmatprep.subr.mxu0 0.0
        %589 = vmatpush1.msra.mxu0 %v546
        %590 = vmatprep.subr.mxu0 0.0
        %591 = vmatpush1.msra.mxu0 %v547
        %592 = vmatprep.subr.mxu0 0.0
        %593 = vmatpush1.msra.mxu0 %v548
        %594 = vmatprep.subr.mxu0 0.0
        %595 = vmatpush1.msra.mxu0 %v549
        %596 = vmatprep.subr.mxu0 0.0
        %597 = vmatpush1.msra.mxu0 %v550
        %598 = vmatprep.subr.mxu0 0.0
        %599 = vmatpush1.msra.mxu0 %v551
        %600 = vmatprep.subr.mxu0 0.0
        %601 = vmatpush1.msra.mxu0 %v552
        %602 = vmatprep.subr.mxu0 0.0
        %603 = vmatpush1.msra.mxu0 %v553
        %604 = vmatprep.subr.mxu0 0.0
        %605 = vmatpush1.msra.mxu0 %v554
        %606 = vmatprep.subr.mxu0 0.0
        %607 = vmatpush1.msra.mxu0 %v555
        %608 = vmatprep.subr.mxu0 0.0
        %609 = vmatpush1.msra.mxu0 %v556
        %610 = vmatprep.subr.mxu0 0.0
        %611 = vmatpush1.msra.mxu0 %v557
        %612 = vmatprep.subr.mxu0 0.0
        %613 = vmatpush1.msra.mxu0 %v558
        %614 = vmatprep.subr.mxu0 0.0
        %615 = vmatpush1.msra.mxu0 %v559
        %616 = vmatprep.subr.mxu0 0.0
        %617 = vmatpush1.msra.mxu0 %v560
        %618 = vmatprep.subr.mxu0 0.0
        %619 = vmatpush1.msra.mxu0 %v561
        %620 = vmatprep.subr.mxu0 0.0
        %621 = vmatpush1.msra.mxu0 %v562
        %622 = vmatprep.subr.mxu0 0.0
        %623 = vmatpush1.msra.mxu0 %v563
        %624 = vmatprep.subr.mxu0 0.0
        %625 = vmatpush1.msra.mxu0 %v564
        %626 = vmatprep.subr.mxu0 0.0
        %627 = vmatpush1.msra.mxu0 %v565
        %628 = vmatprep.subr.mxu0 0.0
        %629 = vmatpush1.msra.mxu0 %v566
        %630 = vmatprep.subr.mxu0 0.0
        %631 = vmatpush1.msra.mxu0 %v567
        %632 = vmatprep.mubr.f32.mxu0 %v535
        %633 = vmatmul.mubr.f32.gmra.mrb[0].mxu0 %v534
        %v634 = vpop.f32.mrb[0].mxu0
        %v635 = vadd.f32 0.0, %v634
        %v636 = vpop.f32.mrb[0].mxu0
        %637 = vdwg.mxu0
        %638 = vst [vmem:[%s227] sm:$0xff] %v635
        %s639 = sand.u32 %s109, 1
        %s640 = scalar_lea.sflag [#allocation5], %s639
        %s641 = sand.u32 %s109, 1
        %s642 = smul.addr %s641, 8
        %s643 = scalar_lea.vmem [#allocation8], %s642
        // Predicated region
        $region41: #{tpu_custom_call.1} parent=27 // pred_check
          %p644 = pneg %p119
        $region42: #{tpu_custom_call.1} parent=27 // pred_check_branch
          %646 = sbr.rel (%p644) target = $region44
        $region43: #{tpu_custom_call.1} parent=27 // pred_region
          %s648 = ssub.s32 128, 128
          %649 = vsyncadd %s640, %s648
          %s650 = smul.addr %s29, 2
          %s651 = sadd.s32 %s28, %s650
          %s652 = smul.addr %s27, 4
          %s653 = sadd.s32 %s651, %s652
          %s654 = smul.addr %s653, 128
          %s655 = scalar_lea.hbm %s2, %s654
          %s657 = sshll.u32 %s643, 4
          %s658 = int_to_ptr.vmem [resolvable:$true] %s657
          %660 = dma.vmem_to_hbm [thread:$0]  %s658, 128, %s655, %s640
        $region44: #{tpu_custom_call.1} parent=27 // pred_fallthru
          _
      $region28: #{tpu_custom_call.1} parent=5 // pred_fallthru
        _
      %p661 = scmp.le.s32.totalorder 2, %s17
      // Predicated region
      $region45: #{tpu_custom_call.1} parent=5 // pred_check
        %p662 = pneg %p661
      $region46: #{tpu_custom_call.1} parent=5 // pred_check_branch
        %664 = sbr.rel (%p662) target = $region48
      $region47: #{tpu_custom_call.1} parent=5 // pred_region
        %s665 = ssub.s32 %s17, 2
        // Predicated region
        $region49: #{tpu_custom_call.1} parent=47 // pred_check
          %p666 = pneg %p125
        $region50: #{tpu_custom_call.1} parent=47 // pred_check_branch
          %668 = sbr.rel (%p666) target = $region52
        $region51: #{tpu_custom_call.1} parent=47 // pred_region
          %s669 = sand.u32 %s110, 1
          %s670 = scalar_lea.sflag [#allocation5], %s669
          %s671 = sand.u32 %s110, 1
          %s672 = smul.addr %s671, 8
          %s673 = scalar_lea.vmem [#allocation8], %s672
          %674 = dma.done %s670, 128
        $region52: #{tpu_custom_call.1} parent=47 // pred_fallthru
          _
      $region48: #{tpu_custom_call.1} parent=5 // pred_fallthru
        _
    $region6: #{tpu_custom_call.1} parent=1 // loop_footer
      %s21 = sadd.s32 1, %s17
    $region7: #{tpu_custom_call.1} parent=1 // loop_footer_branch
      %16 = sbr.rel target = $region3
    $region8: #{tpu_custom_call.1} parent=1 // loop_exit
      _
    %675 = vsyncpa [#allocation4], 1
    %s676 = scalar_lea.sflag [#allocation4], 1
    %677 = vsyncpa %s676, 1
    %678 = vsyncpa [#allocation7], 1
    %s679 = scalar_lea.sflag [#allocation7], 1
    %680 = vsyncpa %s679, 1
    %681 = vsyncpa [#allocation5], 1
    %s682 = scalar_lea.sflag [#allocation5], 1
    %683 = vsyncpa %s682, 1

</llo_original>
